<compile_context>
chip_gen: v5e
topology: v5e:2x2
jax: 0.10.0
libtpu: 0.0.40
codegen_flags: <defaults>
</compile_context>

<pallas_src>
import functools

import jax
import jax.numpy as jnp
from jax.experimental import pallas as pl
from jax.experimental.pallas import tpu as pltpu


# ----------------------------------------------------------------------------
# Kernel
# ----------------------------------------------------------------------------

def _fast_recip(x):
    # EUP approximate reciprocal (its own VLIW slot) + two Newton-Raphson
    # refinement steps on the VPU -> ~f32 accuracy on tiny (tb, 1)/(tb, K)
    # tensors.  (pl.reciprocal(approx=False) expands to VPU Newton iterations
    # anyway; this keeps the seed off the VALU.)
    r = pl.reciprocal(x, approx=True)
    r = r * (2.0 - x * r)
    r = r * (2.0 - x * r)
    return r


def _sle_decoder_kernel(x_ref, w_ref, bias_ref, out_ref):
    # x_ref:    (tb, H)    batch tile of encoded inputs (f32 or bf16)
    # w_ref:    (H, K+1)   full linear weight (same dtype as x)
    # bias_ref: (1, K+1)   full linear bias (f32)
    # out_ref:  (tb, K+1)  fused output: [:, :K] = beliefs, [:, K] = u_max
    k1 = out_ref.shape[-1]
    k = k1 - 1

    # Linear layer on the MXU, f32 accumulation.
    logits = jnp.dot(
        x_ref[...], w_ref[...], preferred_element_type=jnp.float32
    ) + bias_ref[...]

    # Softmax over the (beliefs, uncertainty) simplex.
    m = jnp.max(logits, axis=-1, keepdims=True)
    e = jnp.exp(logits - m)
    params = e * _fast_recip(jnp.sum(e, axis=-1, keepdims=True))

    beliefs = params[:, :k]          # (tb, K)
    u = params[:, k:]                # (tb, 1)

    # SLDirichlet concentration parameters and mean.
    alphas = beliefs * jnp.float32(k) * _fast_recip(u) + 1.0
    mean = alphas * _fast_recip(jnp.sum(alphas, axis=-1, keepdims=True))

    # max_uncertainty(): uniform base rates a = 1/K.
    u_max = jnp.float32(k) * jnp.min(mean, axis=-1, keepdims=True)
    b_new = mean - u_max * (1.0 / jnp.float32(k))

    # Single full-block store (avoids a separate single-lane masked store for
    # the u_max column).
    out_ref[...] = jnp.concatenate([b_new, u_max], axis=-1).astype(out_ref.dtype)


# ----------------------------------------------------------------------------
# Tiling / VMEM heuristics
# ----------------------------------------------------------------------------

_SUBLANE_FOR_ITEMSIZE = {4: 8, 2: 16, 1: 32}   # f32 / bf16 / int8-fp8 packing
_SINGLE_BUFFER_BYTES = 1 << 20                 # weight >= 1 MiB -> Buffered(1)
_TARGET_X_BYTES_PER_STEP = 4 << 20             # ~4 MiB of x per grid step


def _round_up(x, m):
    return (x + m - 1) // m * m


def _padded_bytes(rows, cols, itemsize, row_mult):
    """Bytes a (rows, cols) VMEM buffer really occupies (lane/sublane padding)."""
    return _round_up(max(rows, 1), row_mult) * _round_up(max(cols, 1), 128) * itemsize


def _tpu_memory_profile():
    """Returns (vmem_budget_bytes, vmem_limit_bytes, two_tensorcores)."""
    vmem_phys = None
    try:
        info = pltpu.get_tpu_info()
        vmem_phys = getattr(info, "vmem_capacity_bytes", None)
    except Exception:
        vmem_phys = None
    if vmem_phys is None:
        # Unknown part: assume the smallest VMEM (v7x: 64 MiB per TensorCore).
        return 36 << 20, 48 << 20, True
    if vmem_phys <= (64 << 20):
        # v7x-class: 64 MiB physical VMEM per TC, 2 TensorCores per chip.
        return 36 << 20, 48 << 20, True
    # v5e / v6e: 128 MiB physical VMEM, single TensorCore.
    return 72 << 20, 96 << 20, False


def _choose_tb(batch, hidden, k1, x_itemsize, vmem_budget_bytes, two_cores):
    """Batch tile sized by bytes streamed per step, clamped by padded VMEM use."""
    sub = _SUBLANE_FOR_ITEMSIZE.get(x_itemsize, 8)
    h_pad = _round_up(hidden, 128)

    # Byte-targeted tile: enough x per grid step to amortize ~0.35 us/step.
    tb = max(sub, _round_up(pl.cdiv(_TARGET_X_BYTES_PER_STEP, h_pad * x_itemsize), sub))

    w_bytes = _padded_bytes(hidden, k1, x_itemsize, sub)
    w_bufs = 1 if w_bytes >= _SINGLE_BUFFER_BYTES else 2

    def vmem_need(t):
        return (2 * _padded_bytes(t, hidden, x_itemsize, sub)   # x, double-buffered
                + 2 * _padded_bytes(t, k1, 4, 8)                # out (f32), double-buffered
                + w_bufs * w_bytes                               # resident weight
                + 2 * _padded_bytes(1, k1, 4, 8))               # bias

    while tb > sub and vmem_need(tb) > vmem_budget_bytes:
        tb = max(sub, _round_up(tb // 2, sub))

    bp = _round_up(batch, sub)
    if tb >= bp:
        # Whole batch fits in one tile.
        tb = bp
        # Split into 2 grid steps only on 2-TensorCore parts (v7x) and only
        # if each half still streams >= 1 MiB of x (otherwise the extra
        # pipeline step costs more than it parallelizes).
        if two_cores and bp >= 2 * sub:
            half = _round_up(pl.cdiv(bp, 2), sub)
            if _padded_bytes(half, hidden, x_itemsize, sub) >= (1 << 20):
                tb = half
    return tb


def _grid_invariant_spec(block_shape, single_buffer):
    """BlockSpec for an input whose block index never changes across the grid."""
    index_map = lambda i: (0, 0)
    if single_buffer:
        try:
            # Reclaim the second buffer of a large resident weight.
            return pl.BlockSpec(block_shape, index_map, pipeline_mode=pl.Buffered(1))
        except TypeError:
            pass
    return pl.BlockSpec(block_shape, index_map)


# ----------------------------------------------------------------------------
# Wrapper
# ----------------------------------------------------------------------------

@functools.partial(jax.jit, static_argnames=("tb", "compute_dtype"))
def sle_decoder_forward(x, weight, bias, *, tb=None, compute_dtype=None):
    """SLEDecoder.forward.

    Args:
      x:      (B, H)   encoded inputs.
      weight: (H, K+1) linear weight (transposed vs torch's (out, in)).
      bias:   (K+1,)   linear bias.
      tb:     optional batch tile override.
      compute_dtype: optional streaming dtype for x / weight (e.g. bf16 on any
                     part, int8 on v5e/v6e, fp8 on v7x); matmul accumulates in
                     f32 and all post-matmul math stays f32.

    Returns:
      (beliefs (B, K), uncertainty (B, 1)) parameterizing the
      maximum-uncertainty SLDirichlet.
    """
    B, H = x.shape
    K1 = weight.shape[1]             # output_size + 1
    K = K1 - 1

    if compute_dtype is not None:
        x = x.astype(compute_dtype)
        weight = weight.astype(compute_dtype)
    bias2d = bias.reshape(1, K1).astype(jnp.float32)

    itemsize = jnp.dtype(x.dtype).itemsize
    sub = _SUBLANE_FOR_ITEMSIZE.get(itemsize, 8)

    vmem_budget, vmem_limit, two_cores = _tpu_memory_profile()

    if tb is None:
        tb = _choose_tb(B, H, K1, itemsize, vmem_budget, two_cores)
    tb = max(sub, _round_up(tb, sub))

    # No jnp.pad copy of x: a non-divisible grid uses a partial boundary
    # block.  All math is strictly row-wise, so out-of-range rows are
    # row-isolated and are never written back past row B.
    grid = (pl.cdiv(B, tb),)

    cost = pl.CostEstimate(
        flops=2 * B * H * K1,
        transcendentals=B * (K1 + 3),                       # exp + approx recips
        bytes_accessed=B * H * itemsize + H * K1 * itemsize + B * K1 * 4,
    )

    w_resident_bytes = _padded_bytes(H, K1, itemsize, sub)
    w_spec = _grid_invariant_spec(
        (H, K1), single_buffer=w_resident_bytes >= _SINGLE_BUFFER_BYTES)
    b_spec = _grid_invariant_spec((1, K1), single_buffer=False)

    fused = pl.pallas_call(
        _sle_decoder_kernel,
        out_shape=jax.ShapeDtypeStruct((B, K1), jnp.float32),
        grid_spec=pl.GridSpec(
            grid=grid,
            in_specs=[
                pl.BlockSpec((tb, H), lambda i: (i, 0)),    # x batch tile
                w_spec,                                     # full weight
                b_spec,                                     # full bias
            ],
            out_specs=pl.BlockSpec((tb, K1), lambda i: (i, 0)),
        ),
        compiler_params=pltpu.CompilerParams(
            dimension_semantics=("parallel",),
            vmem_limit_bytes=vmem_limit,
        ),
        cost_estimate=cost,
    )(x, weight, bias2d)

    return fused[:, :K], fused[:, K:]


# ----------------------------------------------------------------------------
# Pure-JAX reference + self-test
# ----------------------------------------------------------------------------

def _reference(x, weight, bias):
    K = weight.shape[1] - 1
    logits = jnp.dot(x.astype(jnp.float32), weight.astype(jnp.float32),
                     precision=jax.lax.Precision.HIGHEST) + bias
    params = jax.nn.softmax(logits, axis=-1)
    beliefs, u = params[:, :K], params[:, K:]
    alphas = beliefs * K / u + 1.0
    mean = alphas / jnp.sum(alphas, axis=-1, keepdims=True)
    u_max = K * jnp.min(mean, axis=-1, keepdims=True)
    b_new = mean - u_max / K
    return b_new, u_max


if __name__ == "__main__":
    hidden_size, output_size = 32, 4     # output_size >= 3 -> SLDirichlet path
    key = jax.random.PRNGKey(0)
    kx, kw, kb, kx2 = jax.random.split(key, 4)

    bound = 1.0 / jnp.sqrt(hidden_size)
    weight = jax.random.uniform(
        kw, (hidden_size, output_size + 1), minval=-bound, maxval=bound,
        dtype=jnp.float32)
    bias = jax.random.uniform(
        kb, (output_size + 1,), minval=-bound, maxval=bound, dtype=jnp.float32)

    # --- f32 path, batch divisible by 8 ---
    batch = 16
    x = jax.random.normal(kx, (batch, hidden_size), dtype=jnp.float32)
    beliefs, uncertainty = sle_decoder_forward(x, weight, bias)
    jax.block_until_ready((beliefs, uncertainty))
    ref_b, ref_u = _reference(x, weight, bias)
    # Tolerance accounts for the MXU f32 matmul's multi-pass bf16 decomposition
    # and the approx-reciprocal + Newton refinement.
    assert jnp.allclose(beliefs, ref_b, atol=1e-4, rtol=1e-4)
    assert jnp.allclose(uncertainty, ref_u, atol=1e-4, rtol=1e-4)

    # --- f32 path, ragged batch (exercises partial boundary block, no pad) ---
    batch2 = 50
    x2 = jax.random.normal(kx2, (batch2, hidden_size), dtype=jnp.float32)
    b2, u2 = sle_decoder_forward(x2, weight, bias)
    jax.block_until_ready((b2, u2))
    rb2, ru2 = _reference(x2, weight, bias)
    assert b2.shape == (batch2, output_size) and u2.shape == (batch2, 1)
    assert jnp.allclose(b2, rb2, atol=1e-4, rtol=1e-4)
    assert jnp.allclose(u2, ru2, atol=1e-4, rtol=1e-4)

    # --- bf16 streaming path (halves x HBM traffic), vs bf16-rounded ref ---
    b3, u3 = sle_decoder_forward(x, weight, bias, compute_dtype=jnp.bfloat16)
    jax.block_until_ready((b3, u3))
    rb3, ru3 = _reference(x.astype(jnp.bfloat16), weight.astype(jnp.bfloat16), bias)
    assert jnp.allclose(b3, rb3, atol=5e-3, rtol=5e-3)
    assert jnp.allclose(u3, ru3, atol=5e-3, rtol=5e-3)

    print("KERNEL_OK")
</pallas_src>

<mosaic_0001>
module attributes {stable_mosaic.version = 11 : i64} {
  func.func @_sle_decoder_kernel(%arg0: i32, %arg1: memref<16x32xf32, #tpu.memory_space<vmem>>, %arg2: memref<32x5xf32, #tpu.memory_space<vmem>>, %arg3: memref<1x5xf32, #tpu.memory_space<vmem>>, %arg4: memref<16x5xf32, #tpu.memory_space<vmem>>) attributes {dimension_semantics = [#tpu.dimension_semantics<parallel>], iteration_bounds = array<i64: 1>, scalar_prefetch = 0 : i64, scratch_operands = 0 : i64, tpu.core_type = #tpu.core_type<tc>, window_params = [{transform_indices = @transform_0, window_bounds = array<i64: 16, 32>}, {pipeline_mode = #tpu.pipeline_mode<synchronous>, transform_indices = @transform_1, window_bounds = array<i64: 32, 5>}, {pipeline_mode = #tpu.pipeline_mode<synchronous>, transform_indices = @transform_2, window_bounds = array<i64: 1, 5>}, {transform_indices = @transform_3, window_bounds = array<i64: 16, 5>}]} {
    %c0 = arith.constant 0 : index
    %c0_0 = arith.constant 0 : index
    %0 = vector.load %arg1[%c0, %c0_0] : memref<16x32xf32, #tpu.memory_space<vmem>>, vector<16x32xf32>
    %c0_1 = arith.constant 0 : index
    %c0_2 = arith.constant 0 : index
    %1 = vector.load %arg2[%c0_1, %c0_2] : memref<32x5xf32, #tpu.memory_space<vmem>>, vector<32x5xf32>
    %cst = arith.constant dense<0.000000e+00> : vector<16x5xf32>
    %2 = tpu.matmul %0, %1, %cst {dimension_numbers = #tpu.dot_dimension_numbers<[1], [0], [0], [1], [0, 0, 1, 1], [], []>} : vector<16x32xf32>, vector<32x5xf32>, vector<16x5xf32> -> vector<16x5xf32>
    %c0_3 = arith.constant 0 : index
    %c0_4 = arith.constant 0 : index
    %3 = vector.load %arg3[%c0_3, %c0_4] : memref<1x5xf32, #tpu.memory_space<vmem>>, vector<1x5xf32>
    %4 = vector.broadcast %3 : vector<1x5xf32> to vector<16x5xf32>
    %5 = arith.addf %2, %4 : vector<16x5xf32>
    %cst_5 = arith.constant dense<0xFF800000> : vector<16xf32>
    %6 = vector.multi_reduction <maximumf>, %5, %cst_5 [1] : vector<16x5xf32> to vector<16xf32>
    %7 = vector.shape_cast %6 : vector<16xf32> to vector<16x1xf32>
    %8 = vector.broadcast %7 : vector<16x1xf32> to vector<16x5xf32>
    %9 = arith.subf %5, %8 : vector<16x5xf32>
    %10 = math.exp %9 : vector<16x5xf32>
    %cst_6 = arith.constant dense<0.000000e+00> : vector<16xf32>
    %11 = vector.multi_reduction <add>, %10, %cst_6 [1] : vector<16x5xf32> to vector<16xf32>
    %12 = vector.shape_cast %11 : vector<16xf32> to vector<16x1xf32>
    %13 = tpu.reciprocal %12 {approx = true} : vector<16x1xf32> -> vector<16x1xf32>
    %14 = arith.mulf %12, %13 : vector<16x1xf32>
    %cst_7 = arith.constant 2.000000e+00 : f32
    %15 = vector.broadcast %cst_7 : f32 to vector<16x1xf32>
    %16 = arith.subf %15, %14 : vector<16x1xf32>
    %17 = arith.mulf %13, %16 : vector<16x1xf32>
    %18 = arith.mulf %12, %17 : vector<16x1xf32>
    %cst_8 = arith.constant 2.000000e+00 : f32
    %19 = vector.broadcast %cst_8 : f32 to vector<16x1xf32>
    %20 = arith.subf %19, %18 : vector<16x1xf32>
    %21 = arith.mulf %17, %20 : vector<16x1xf32>
    %22 = vector.broadcast %21 : vector<16x1xf32> to vector<16x5xf32>
    %23 = arith.mulf %10, %22 : vector<16x5xf32>
    %24 = vector.extract_strided_slice %23 {offsets = [0, 0], sizes = [16, 4], strides = [1, 1]} : vector<16x5xf32> to vector<16x4xf32>
    %25 = vector.extract_strided_slice %23 {offsets = [0, 4], sizes = [16, 1], strides = [1, 1]} : vector<16x5xf32> to vector<16x1xf32>
    %cst_9 = arith.constant 4.000000e+00 : f32
    %26 = vector.broadcast %cst_9 : f32 to vector<16x4xf32>
    %27 = arith.mulf %24, %26 : vector<16x4xf32>
    %28 = tpu.reciprocal %25 {approx = true} : vector<16x1xf32> -> vector<16x1xf32>
    %29 = arith.mulf %25, %28 : vector<16x1xf32>
    %cst_10 = arith.constant 2.000000e+00 : f32
    %30 = vector.broadcast %cst_10 : f32 to vector<16x1xf32>
    %31 = arith.subf %30, %29 : vector<16x1xf32>
    %32 = arith.mulf %28, %31 : vector<16x1xf32>
    %33 = arith.mulf %25, %32 : vector<16x1xf32>
    %cst_11 = arith.constant 2.000000e+00 : f32
    %34 = vector.broadcast %cst_11 : f32 to vector<16x1xf32>
    %35 = arith.subf %34, %33 : vector<16x1xf32>
    %36 = arith.mulf %32, %35 : vector<16x1xf32>
    %37 = vector.broadcast %36 : vector<16x1xf32> to vector<16x4xf32>
    %38 = arith.mulf %27, %37 : vector<16x4xf32>
    %cst_12 = arith.constant 1.000000e+00 : f32
    %39 = vector.broadcast %cst_12 : f32 to vector<16x4xf32>
    %40 = arith.addf %38, %39 : vector<16x4xf32>
    %cst_13 = arith.constant dense<0.000000e+00> : vector<16xf32>
    %41 = vector.multi_reduction <add>, %40, %cst_13 [1] : vector<16x4xf32> to vector<16xf32>
    %42 = vector.shape_cast %41 : vector<16xf32> to vector<16x1xf32>
    %43 = tpu.reciprocal %42 {approx = true} : vector<16x1xf32> -> vector<16x1xf32>
    %44 = arith.mulf %42, %43 : vector<16x1xf32>
    %cst_14 = arith.constant 2.000000e+00 : f32
    %45 = vector.broadcast %cst_14 : f32 to vector<16x1xf32>
    %46 = arith.subf %45, %44 : vector<16x1xf32>
    %47 = arith.mulf %43, %46 : vector<16x1xf32>
    %48 = arith.mulf %42, %47 : vector<16x1xf32>
    %cst_15 = arith.constant 2.000000e+00 : f32
    %49 = vector.broadcast %cst_15 : f32 to vector<16x1xf32>
    %50 = arith.subf %49, %48 : vector<16x1xf32>
    %51 = arith.mulf %47, %50 : vector<16x1xf32>
    %52 = vector.broadcast %51 : vector<16x1xf32> to vector<16x4xf32>
    %53 = arith.mulf %40, %52 : vector<16x4xf32>
    %cst_16 = arith.constant dense<0x7F800000> : vector<16xf32>
    %54 = vector.multi_reduction <minimumf>, %53, %cst_16 [1] : vector<16x4xf32> to vector<16xf32>
    %55 = vector.shape_cast %54 : vector<16xf32> to vector<16x1xf32>
    %cst_17 = arith.constant 4.000000e+00 : f32
    %56 = vector.broadcast %cst_17 : f32 to vector<16x1xf32>
    %57 = arith.mulf %56, %55 : vector<16x1xf32>
    %cst_18 = arith.constant 1.000000e+00 : f32
    %cst_19 = arith.constant 4.000000e+00 : f32
    %58 = arith.divf %cst_18, %cst_19 : f32
    %59 = vector.broadcast %58 : f32 to vector<16x1xf32>
    %60 = arith.mulf %57, %59 : vector<16x1xf32>
    %61 = vector.broadcast %60 : vector<16x1xf32> to vector<16x4xf32>
    %62 = arith.subf %53, %61 : vector<16x4xf32>
    %63 = tpu.concatenate %62, %57 in 1 : vector<16x4xf32>, vector<16x1xf32> -> vector<16x5xf32>
    %c0_20 = arith.constant 0 : index
    %c0_21 = arith.constant 0 : index
    %64 = vector.load %arg4[%c0_20, %c0_21] : memref<16x5xf32, #tpu.memory_space<vmem>>, vector<16x5xf32>
    tpu.vector_store %arg4[%c0_20, %c0_21], %63 {strides = array<i32>} : memref<16x5xf32, #tpu.memory_space<vmem>>, vector<16x5xf32>,
    return
  }
  func.func @transform_0(%arg0: i32) -> (i32, i32) {
    %c0_i32 = arith.constant 0 : i32
    %c0_i32_0 = arith.constant 0 : i32
    return %arg0, %c0_i32 : i32, i32
  }
  func.func @transform_1(%arg0: i32) -> (i32, i32) {
    %c0_i32 = arith.constant 0 : i32
    %c0_i32_0 = arith.constant 0 : i32
    %c0_i32_1 = arith.constant 0 : i32
    return %c0_i32, %c0_i32_0 : i32, i32
  }
  func.func @transform_2(%arg0: i32) -> (i32, i32) {
    %c0_i32 = arith.constant 0 : i32
    %c0_i32_0 = arith.constant 0 : i32
    %c0_i32_1 = arith.constant 0 : i32
    return %c0_i32, %c0_i32_0 : i32, i32
  }
  func.func @transform_3(%arg0: i32) -> (i32, i32) {
    %c0_i32 = arith.constant 0 : i32
    %c0_i32_0 = arith.constant 0 : i32
    return %arg0, %c0_i32 : i32, i32
  }
}

</mosaic_0001>

<llo_original>
// kernel: sle_decoder_forward.1
$region0: #{sle_decoder_forward.1}
  #allocation0 [shape = 'u32[]', space=smem, size = 0x4, offset = 0x4, fixed_abs, tag = 'smem constant byte address 0x4 - core index']
  #allocation1 [shape = 'u32[72,128]{1,0:T(1,128)}', space=vmem, size = 0x9000, scoped, tag = 'internal scratch']
  %s0 = inlined_call_operand.vmem [shape: f32[16,32], index: 0, kind: input, shape index: {}]
  %s1 = inlined_call_operand.vmem [shape: f32[32,5], index: 1, kind: input, shape index: {}]
  %s2 = inlined_call_operand.vmem [shape: f32[1,5], index: 2, kind: input, shape index: {}]
  %s3 = inlined_call_operand.vmem [shape: f32[16,5], index: 3, kind: output, shape index: {}]
  %s4 = sld [smem:[#allocation0]]
  $region22: #{sle_decoder_forward.1} parent=0
    _
  %s6 = ssub.s32 1, %s4
  %s7 = scalar_select 0, %s6, %s4
  // Predicated region
  $region2: #{sle_decoder_forward.1} parent=0 // pred_check
    _
  $region3: #{sle_decoder_forward.1} parent=0 // pred_check_branch
    %9 = sbr.rel (0) target = $region5
  $region4: #{sle_decoder_forward.1} parent=0 // pred_region
    _
  $region5: #{sle_decoder_forward.1} parent=0 // pred_fallthru
    _
  // Predicated region
  $region6: #{sle_decoder_forward.1} parent=0 // pred_check
    _
  $region7: #{sle_decoder_forward.1} parent=0 // pred_check_branch
    %11 = sbr.rel (0) target = $region9
  $region8: #{sle_decoder_forward.1} parent=0 // pred_region
    _
  $region9: #{sle_decoder_forward.1} parent=0 // pred_fallthru
    _
  // Predicated region
  $region10: #{sle_decoder_forward.1} parent=0 // pred_check
    _
  $region11: #{sle_decoder_forward.1} parent=0 // pred_check_branch
    %13 = sbr.rel (0) target = $region13
  $region12: #{sle_decoder_forward.1} parent=0 // pred_region
    _
  $region13: #{sle_decoder_forward.1} parent=0 // pred_fallthru
    _
  %v14 = vld [vmem:[%s0] sm:$0xff]
  %v15 = vld [vmem:[%s0 + $0x8] sm:$0xff]
  %v16 = vld [vmem:[%s1] sm:$0xff]
  %v17 = vld [vmem:[%s1 + $0x8] sm:$0xff]
  %v18 = vld [vmem:[%s1 + $0x10] sm:$0xff]
  %v19 = vld [vmem:[%s1 + $0x18] sm:$0xff]
  %v20 = vld [vmem:[%s2] sm:$0x1]
  %v22 = vperm.slane %v20, 0
  %vm24 = vcmask 261120
  %v26 = vsel %vm24, %v14, 0
  %v29 = vsel %vm24, %v15, 0
  %31 = vmatpush.msra.mxu0 0.0
  %32 = vmatpush.msra.mxu0 0.0
  %33 = vmatpush.msra.mxu0 0.0
  %34 = vmatpush.msra.mxu0 0.0
  %35 = vmatpush.msra.mxu0 0.0
  %36 = vmatpush.msra.mxu0 0.0
  %37 = vmatpush.msra.mxu0 0.0
  %38 = vmatpush.msra.mxu0 0.0
  %39 = vmatpush.msra.mxu0 0.0
  %40 = vmatpush.msra.mxu0 0.0
  %41 = vmatpush.msra.mxu0 0.0
  %42 = vmatpush.msra.mxu0 0.0
  %43 = vmatpush.msra.mxu0 %v19
  %44 = vmatpush.msra.mxu0 %v18
  %45 = vmatpush.msra.mxu0 %v17
  %46 = vmatpush.msra.mxu0 %v16
  %47 = vmatmul.f32.gmra.mxu0 %v26
  %v48 = vpop.f32.mrf.mxu0
  %v49 = vadd.f32 %v22, %v48
  %50 = vmatmul.f32.gmra.mxu0 %v29
  %v51 = vpop.f32.mrf.mxu0
  %v52 = vadd.f32 %v22, %v51
  %53 = vdwg.mxu0
  %vm54 = vcmask 39936
  %v55 = vsel %vm54, %v49, -inf
  %56 = vmax.xlane.f32.xlu0 %v55
  %v57 = vpop.xlane.xlu0 %56
  %v58 = vsel %vm54, %v52, -inf
  %59 = vmax.xlane.f32.xlu0 %v58
  %v60 = vpop.xlane.xlu0 %59
  %v61 = vsub.f32 %v49, %v57
  %v62 = vsub.f32 %v52, %v60
  %v63 = vmul.f32 %v61, 1.442695
  %v64 = vpow.pop %v63
  %v65 = vmul.f32 %v62, 1.442695
  %v66 = vpow.pop %v65
  %v67 = vsel %vm54, %v64, 0.0
  %68 = vadd.xlane.f32.xlu0 %v67
  %v69 = vpop.xlane.xlu0 %68
  %v70 = vsel %vm54, %v66, 0.0
  %71 = vadd.xlane.f32.xlu0 %v70
  %v72 = vpop.xlane.xlu0 %71
  %v73 = vrcp.pop %v69
  %v74 = vrcp.pop %v72
  %v75 = vmul.f32 %v69, %v73
  %v76 = vmul.f32 %v72, %v74
  %v77 = vsub.f32 2.0, %v75
  %v78 = vsub.f32 2.0, %v76
  %v79 = vmul.f32 %v73, %v77
  %v80 = vmul.f32 %v74, %v78
  %v81 = vmul.f32 %v69, %v79
  %v82 = vmul.f32 %v72, %v80
  %v83 = vsub.f32 2.0, %v81
  %v84 = vsub.f32 2.0, %v82
  %v85 = vmul.f32 %v79, %v83
  %v86 = vmul.f32 %v80, %v84
  %v87 = vmul.f32 %v64, %v85
  %v88 = vmul.f32 %v66, %v86
  %v89 = vmul.f32 %v87, 4.0
  %v90 = vmul.f32 %v88, 4.0
  %v91 = vrcp.pop %v87
  %v92 = vrcp.pop %v88
  %v93 = vmul.f32 %v87, %v91
  %v94 = vmul.f32 %v88, %v92
  %v95 = vsub.f32 2.0, %v93
  %v96 = vsub.f32 2.0, %v94
  %v97 = vmul.f32 %v91, %v95
  %v98 = vmul.f32 %v92, %v96
  %v99 = vmul.f32 %v87, %v97
  %v100 = vmul.f32 %v88, %v98
  %v101 = vsub.f32 2.0, %v99
  %v102 = vsub.f32 2.0, %v100
  %v103 = vmul.f32 %v97, %v101
  %v104 = vmul.f32 %v98, %v102
  %106 = vset.pattern.permute.xlu0 4
  %107 = vperm.xlu0 %106, %v103
  %v108 = vpop.permute.xlu0 %107
  %111 = vset.pattern.permute.xlu0 4
  %112 = vperm.xlu0 %111, %v104
  %v113 = vpop.permute.xlu0 %112
  %v115 = vmul.f32 %v89, %v108
  %v116 = vmul.f32 %v90, %v113
  %v117 = vadd.f32 %v115, 1.0
  %v118 = vadd.f32 %v116, 1.0
  %vm119 = vcmask 31744
  %v120 = vsel %vm119, %v117, 0.0
  %121 = vadd.xlane.f32.xlu0 %v120
  %v122 = vpop.xlane.xlu0 %121
  %v123 = vsel %vm119, %v118, 0.0
  %124 = vadd.xlane.f32.xlu0 %v123
  %v125 = vpop.xlane.xlu0 %124
  %v126 = vrcp.pop %v122
  %v127 = vrcp.pop %v125
  %v128 = vmul.f32 %v122, %v126
  %v129 = vmul.f32 %v125, %v127
  %v130 = vsub.f32 2.0, %v128
  %v131 = vsub.f32 2.0, %v129
  %v132 = vmul.f32 %v126, %v130
  %v133 = vmul.f32 %v127, %v131
  %v134 = vmul.f32 %v122, %v132
  %v135 = vmul.f32 %v125, %v133
  %v136 = vsub.f32 2.0, %v134
  %v137 = vsub.f32 2.0, %v135
  %v138 = vmul.f32 %v132, %v136
  %v139 = vmul.f32 %v133, %v137
  %v140 = vmul.f32 %v117, %v138
  %v141 = vmul.f32 %v118, %v139
  %v142 = vsel %vm119, %v140, inf
  %143 = vmin.xlane.f32.xlu0 %v142
  %v144 = vpop.xlane.xlu0 %143
  %v145 = vsel %vm119, %v141, inf
  %146 = vmin.xlane.f32.xlu0 %v145
  %v147 = vpop.xlane.xlu0 %146
  %v148 = vmul.f32 %v144, 4.0
  %v149 = vmul.f32 %v147, 4.0
  %v150 = vmul.f32 %v148, 0.25
  %v151 = vmul.f32 %v149, 0.25
  %v152 = vsub.f32 %v140, %v150
  %v153 = vsub.f32 %v141, %v151
  %v154 = vsel %vm119, %v152, %v148
  %v155 = vsel %vm119, %v153, %v149
  %156 = vst.msk [vmem:[%s3] sm:$0xff] %vm54, %v154
  %157 = vst.msk [vmem:[%s3 + $0x8] sm:$0xff] %vm54, %v155
  // Predicated region
  $region14: #{sle_decoder_forward.1} parent=0 // pred_check
    _
  $region15: #{sle_decoder_forward.1} parent=0 // pred_check_branch
    %159 = sbr.rel (0) target = $region17
  $region16: #{sle_decoder_forward.1} parent=0 // pred_region
    _
  $region17: #{sle_decoder_forward.1} parent=0 // pred_fallthru
    _
  // Predicated region
  $region18: #{sle_decoder_forward.1} parent=0 // pred_check
    _
  $region19: #{sle_decoder_forward.1} parent=0 // pred_check_branch
    %161 = sbr.rel (0) target = $region21
  $region20: #{sle_decoder_forward.1} parent=0 // pred_region
    _
  $region21: #{sle_decoder_forward.1} parent=0 // pred_fallthru
    _

</llo_original>
